<compile_context>
chip_gen: v7x
topology: tpu7x:2x2x1
jax: 0.10.0
libtpu: 0.0.40
codegen_flags: <defaults>
</compile_context>

<pallas_src>
import functools

import jax
import jax.numpy as jnp
from jax.experimental import pallas as pl
from jax.experimental.pallas import tpu as pltpu


BN_EPS = 1e-5        # PyTorch BatchNorm1d default eps
NORM_EPS = 1e-12     # F.normalize default eps


def _pick_k_tile(f_in: int) -> int:
    """Largest nice K-tile (multiple of 256/128) that divides f_in."""
    for t in (512, 256, 128):
        if f_in % t == 0:
            return t
    return f_in


def _keep_threshold_i32(p: float) -> int:
    """int32 threshold t such that P(uniform_i32 >= t) == 1 - p."""
    t = int(round(p * float(2 ** 32))) - 2 ** 31
    return max(-(2 ** 31), min(t, 2 ** 31 - 1))


def _dropout_bits(key, shape):
    """Uniform int32 bits (bitcast of uint32 PRNG output)."""
    u32 = jax.random.bits(key, shape, dtype=jnp.uint32)
    return jax.lax.bitcast_convert_type(u32, jnp.int32)


# ----------------------------- kernels --------------------------------------


def _train_kernel(x_ref, wT_ref, b_ref, bits_ref, o_ref, *,
                  dropout_p, keep_threshold):
    k = pl.program_id(0)

    @pl.when(k == 0)
    def _init():
        o_ref[...] = jnp.zeros_like(o_ref)

    # K-tiled MXU matmul: bf16 inputs, f32 accumulation into the resident
    # output block (same output block index for every k).
    o_ref[...] += jnp.dot(x_ref[...], wT_ref[...],
                          preferred_element_type=jnp.float32)

    @pl.when(k == pl.num_programs(0) - 1)
    def _finalize():
        y = o_ref[...] + b_ref[...]                      # (N, Fout) + (1, Fout)

        # BatchNorm1d, training mode: biased batch stats, gamma=1, beta=0.
        mean = jnp.mean(y, axis=0, keepdims=True)
        c = y - mean
        var = jnp.mean(c * c, axis=0, keepdims=True)
        y = c * jax.lax.rsqrt(var + BN_EPS)

        # F.normalize(p=2, dim=1): y / max(||y||_2, eps).
        sumsq = jnp.sum(y * y, axis=1, keepdims=True)
        inv_norm = jax.lax.rsqrt(jnp.maximum(sumsq, NORM_EPS * NORM_EPS))

        # Dropout: integer-threshold mask on pre-generated bits; fold the
        # 1/(1-p) scale into the per-row normalization multiply.
        keep = bits_ref[...] >= keep_threshold
        row_scale = inv_norm * (1.0 / (1.0 - dropout_p))
        o_ref[...] = jnp.where(keep, y * row_scale, 0.0).astype(o_ref.dtype)


def _eval_kernel(x_ref, o_ref):
    x = x_ref[...].astype(jnp.float32)
    sumsq = jnp.sum(x * x, axis=1, keepdims=True)
    inv_norm = jax.lax.rsqrt(jnp.maximum(sumsq, NORM_EPS * NORM_EPS))
    o_ref[...] = (x * inv_norm).astype(o_ref.dtype)


# ----------------------------- module wrapper --------------------------------


class EmbeddingLayer:
    """JAX/Pallas port of method_BUC EmbeddingLayer (forward pass)."""

    def __init__(self, input_feature_size=2048, embeding_fea_size=1024,
                 dropout=0.5, *, key=None):
        assert 0.0 <= dropout < 1.0, "dropout must be in [0, 1)"
        if key is None:
            key = jax.random.PRNGKey(0)
        self.input_feature_size = input_feature_size
        self.embeding_fea_size = embeding_fea_size
        self.dropout = float(dropout)

        # kaiming_normal_(weight, mode='fan_out'), weight shape (out, in):
        # std = gain / sqrt(fan_out) = sqrt(2 / out_features).
        std = (2.0 / embeding_fea_size) ** 0.5
        w = std * jax.random.normal(
            key, (embeding_fea_size, input_feature_size), dtype=jnp.float32)
        self.weight = w                                   # (out, in), f32
        # Pre-transposed bf16 copy used by the kernel (MXU-native path).
        self.weight_T = w.T.astype(jnp.bfloat16)          # (in, out), bf16
        self.bias = jnp.zeros((embeding_fea_size,), jnp.float32)
        # BN gamma=1, beta=0 are constants folded into the kernel; running
        # stats are not tracked (eval path never uses BN in this module).

    def __call__(self, x, *, training=False, key=None):
        if training:
            if key is None:
                key = jax.random.PRNGKey(0)
            return self._forward_train(x, key)
        return self._forward_eval(x)

    # -- training: Linear -> BN -> L2-normalize -> Dropout --------------------
    def _forward_train(self, x, key):
        n, f_in = x.shape
        assert f_in == self.input_feature_size
        f_out = self.embeding_fea_size
        p = self.dropout

        tk = _pick_k_tile(f_in)
        num_k = f_in // tk

        x_bf = x.astype(jnp.bfloat16)
        bias2d = self.bias.reshape(1, f_out)
        bits = _dropout_bits(key, (n, f_out))

        kernel = functools.partial(
            _train_kernel, dropout_p=p, keep_threshold=_keep_threshold_i32(p))

        return pl.pallas_call(
            kernel,
            out_shape=jax.ShapeDtypeStruct((n, f_out), jnp.float32),
            grid=(num_k,),
            in_specs=[
                pl.BlockSpec((n, tk), lambda k: (0, k)),       # x tile (bf16)
                pl.BlockSpec((tk, f_out), lambda k: (k, 0)),   # W^T tile (bf16)
                pl.BlockSpec((1, f_out), lambda k: (0, 0)),    # bias (f32)
                pl.BlockSpec((n, f_out), lambda k: (0, 0)),    # dropout bits
            ],
            out_specs=pl.BlockSpec((n, f_out), lambda k: (0, 0)),
            compiler_params=pltpu.CompilerParams(
                dimension_semantics=("arbitrary",)),           # K = reduction
        )(x_bf, self.weight_T, bias2d, bits)

    # -- eval: L2-normalize the raw input, row-tiled ---------------------------
    def _forward_eval(self, x):
        n, f = x.shape
        tm = n if n <= 512 else 512                       # rows per tile
        return pl.pallas_call(
            _eval_kernel,
            out_shape=jax.ShapeDtypeStruct((n, f), jnp.float32),
            grid=(pl.cdiv(n, tm),),
            in_specs=[pl.BlockSpec((tm, f), lambda i: (i, 0))],
            out_specs=pl.BlockSpec((tm, f), lambda i: (i, 0)),
            compiler_params=pltpu.CompilerParams(
                dimension_semantics=("parallel",)),
        )(x)


# ----------------------------- demo / self-test -------------------------------


if __name__ == "__main__":
    key = jax.random.PRNGKey(0)
    k_param, k_x, k_drop = jax.random.split(key, 3)

    # Small shapes consistent with the module (batch, in_features, out_features).
    N, F_IN, F_OUT = 16, 512, 256
    P_DROP = 0.5
    layer = EmbeddingLayer(input_feature_size=F_IN, embeding_fea_size=F_OUT,
                           dropout=P_DROP, key=k_param)

    x = jax.random.normal(k_x, (N, F_IN), dtype=jnp.float32)

    # Training path: K-tiled matmul + BN + L2-normalize + dropout.
    y_train = layer(x, training=True, key=k_drop)
    # Eval path: L2-normalize only.
    y_eval = layer(x, training=False)
    jax.block_until_ready((y_train, y_eval))

    # ---- eval reference ----
    ref_eval = x / jnp.maximum(
        jnp.sqrt(jnp.sum(x * x, axis=1, keepdims=True)), NORM_EPS)
    assert y_eval.shape == (N, F_IN)
    assert jnp.allclose(y_eval, ref_eval, atol=1e-5, rtol=1e-5), \
        "eval normalize mismatch"

    # ---- training reference (same bf16 matmul inputs + same dropout bits) ----
    xb = x.astype(jnp.bfloat16)
    y = jnp.dot(xb, layer.weight_T,
                preferred_element_type=jnp.float32) + layer.bias
    mean = jnp.mean(y, axis=0, keepdims=True)
    var = jnp.mean((y - mean) ** 2, axis=0, keepdims=True)
    y = (y - mean) / jnp.sqrt(var + BN_EPS)
    y = y / jnp.maximum(
        jnp.sqrt(jnp.sum(y * y, axis=1, keepdims=True)), NORM_EPS)
    keep = _dropout_bits(k_drop, (N, F_OUT)) >= _keep_threshold_i32(P_DROP)
    ref_train = jnp.where(keep, y / (1.0 - P_DROP), 0.0)

    assert y_train.shape == (N, F_OUT)
    assert jnp.allclose(y_train, ref_train, atol=5e-4, rtol=5e-4), \
        "training path mismatch"

    print("KERNEL_OK")
</pallas_src>

<mosaic_0001>
module attributes {stable_mosaic.version = 11 : i64} {
  func.func @_train_kernel(%arg0: i32, %arg1: memref<16x512xbf16, #tpu.memory_space<vmem>>, %arg2: memref<512x256xbf16, #tpu.memory_space<vmem>>, %arg3: memref<1x256xf32, #tpu.memory_space<vmem>>, %arg4: memref<16x256xi32, #tpu.memory_space<vmem>>, %arg5: memref<16x256xf32, #tpu.memory_space<vmem>>) attributes {dimension_semantics = [#tpu.dimension_semantics<arbitrary>], iteration_bounds = array<i64: 1>, scalar_prefetch = 0 : i64, scratch_operands = 0 : i64, tpu.core_type = #tpu.core_type<tc>, window_params = [{transform_indices = @transform_0, window_bounds = array<i64: 16, 512>}, {transform_indices = @transform_1, window_bounds = array<i64: 512, 256>}, {pipeline_mode = #tpu.pipeline_mode<synchronous>, transform_indices = @transform_2, window_bounds = array<i64: 1, 256>}, {pipeline_mode = #tpu.pipeline_mode<synchronous>, transform_indices = @transform_3, window_bounds = array<i64: 16, 256>}, {pipeline_mode = #tpu.pipeline_mode<synchronous>, transform_indices = @transform_4, window_bounds = array<i64: 16, 256>}]} {
    %c0_i32 = arith.constant 0 : i32
    %0 = arith.cmpi eq, %arg0, %c0_i32 : i32
    %1 = arith.extui %0 : i1 to i32
    %c0_i32_0 = arith.constant 0 : i32
    %2 = arith.cmpi ne, %1, %c0_i32_0 : i32
    scf.if %2 {
      %cst_10 = arith.constant 0.000000e+00 : f32
      %12 = vector.broadcast %cst_10 : f32 to vector<16x256xf32>
      %c0_11 = arith.constant 0 : index
      %c0_12 = arith.constant 0 : index
      %13 = vector.load %arg5[%c0_11, %c0_12] : memref<16x256xf32, #tpu.memory_space<vmem>>, vector<16x256xf32>
      tpu.vector_store %arg5[%c0_11, %c0_12], %12 {strides = array<i32>} : memref<16x256xf32, #tpu.memory_space<vmem>>, vector<16x256xf32>,
    } else {
    }
    %c0 = arith.constant 0 : index
    %c0_1 = arith.constant 0 : index
    %3 = vector.load %arg5[%c0, %c0_1] : memref<16x256xf32, #tpu.memory_space<vmem>>, vector<16x256xf32>
    %c0_2 = arith.constant 0 : index
    %c0_3 = arith.constant 0 : index
    %4 = vector.load %arg1[%c0_2, %c0_3] : memref<16x512xbf16, #tpu.memory_space<vmem>>, vector<16x512xbf16>
    %c0_4 = arith.constant 0 : index
    %c0_5 = arith.constant 0 : index
    %5 = vector.load %arg2[%c0_4, %c0_5] : memref<512x256xbf16, #tpu.memory_space<vmem>>, vector<512x256xbf16>
    %cst = arith.constant dense<0.000000e+00> : vector<16x256xf32>
    %6 = tpu.matmul %4, %5, %cst {dimension_numbers = #tpu.dot_dimension_numbers<[1], [0], [0], [1], [0, 0, 1, 1], [], []>} : vector<16x512xbf16>, vector<512x256xbf16>, vector<16x256xf32> -> vector<16x256xf32>
    %7 = arith.addf %3, %6 : vector<16x256xf32>
    %c0_6 = arith.constant 0 : index
    %c0_7 = arith.constant 0 : index
    %8 = vector.load %arg5[%c0_6, %c0_7] : memref<16x256xf32, #tpu.memory_space<vmem>>, vector<16x256xf32>
    tpu.vector_store %arg5[%c0_6, %c0_7], %7 {strides = array<i32>} : memref<16x256xf32, #tpu.memory_space<vmem>>, vector<16x256xf32>,
    %c0_i32_8 = arith.constant 0 : i32
    %9 = arith.cmpi eq, %arg0, %c0_i32_8 : i32
    %10 = arith.extui %9 : i1 to i32
    %c0_i32_9 = arith.constant 0 : i32
    %11 = arith.cmpi ne, %10, %c0_i32_9 : i32
    scf.if %11 {
      %c0_10 = arith.constant 0 : index
      %c0_11 = arith.constant 0 : index
      %12 = vector.load %arg5[%c0_10, %c0_11] : memref<16x256xf32, #tpu.memory_space<vmem>>, vector<16x256xf32>
      %c0_12 = arith.constant 0 : index
      %c0_13 = arith.constant 0 : index
      %13 = vector.load %arg3[%c0_12, %c0_13] : memref<1x256xf32, #tpu.memory_space<vmem>>, vector<1x256xf32>
      %14 = vector.broadcast %13 : vector<1x256xf32> to vector<16x256xf32>
      %15 = arith.addf %12, %14 : vector<16x256xf32>
      %cst_14 = arith.constant dense<0.000000e+00> : vector<256xf32>
      %16 = vector.multi_reduction <add>, %15, %cst_14 [0] : vector<16x256xf32> to vector<256xf32>
      %17 = vector.shape_cast %16 : vector<256xf32> to vector<1x256xf32>
      %cst_15 = arith.constant 1.600000e+01 : f32
      %18 = vector.broadcast %cst_15 : f32 to vector<1x256xf32>
      %19 = arith.divf %17, %18 : vector<1x256xf32>
      %20 = vector.broadcast %19 : vector<1x256xf32> to vector<16x256xf32>
      %21 = arith.subf %15, %20 : vector<16x256xf32>
      %22 = arith.mulf %21, %21 : vector<16x256xf32>
      %cst_16 = arith.constant dense<0.000000e+00> : vector<256xf32>
      %23 = vector.multi_reduction <add>, %22, %cst_16 [0] : vector<16x256xf32> to vector<256xf32>
      %24 = vector.shape_cast %23 : vector<256xf32> to vector<1x256xf32>
      %cst_17 = arith.constant 1.600000e+01 : f32
      %25 = vector.broadcast %cst_17 : f32 to vector<1x256xf32>
      %26 = arith.divf %24, %25 : vector<1x256xf32>
      %cst_18 = arith.constant 9.99999974E-6 : f32
      %27 = vector.broadcast %cst_18 : f32 to vector<1x256xf32>
      %28 = arith.addf %26, %27 : vector<1x256xf32>
      %29 = math.rsqrt %28 : vector<1x256xf32>
      %30 = vector.broadcast %29 : vector<1x256xf32> to vector<16x256xf32>
      %31 = arith.mulf %21, %30 : vector<16x256xf32>
      %32 = arith.mulf %31, %31 : vector<16x256xf32>
      %cst_19 = arith.constant dense<0.000000e+00> : vector<16xf32>
      %33 = vector.multi_reduction <add>, %32, %cst_19 [1] : vector<16x256xf32> to vector<16xf32>
      %34 = vector.shape_cast %33 : vector<16xf32> to vector<16x1xf32>
      %cst_20 = arith.constant 1.000000e-24 : f32
      %35 = vector.broadcast %cst_20 : f32 to vector<16x1xf32>
      %36 = arith.maximumf %34, %35 : vector<16x1xf32>
      %37 = math.rsqrt %36 : vector<16x1xf32>
      %c0_21 = arith.constant 0 : index
      %c0_22 = arith.constant 0 : index
      %38 = vector.load %arg4[%c0_21, %c0_22] : memref<16x256xi32, #tpu.memory_space<vmem>>, vector<16x256xi32>
      %c0_i32_23 = arith.constant 0 : i32
      %39 = vector.broadcast %c0_i32_23 : i32 to vector<16x256xi32>
      %40 = arith.cmpi sge, %38, %39 : vector<16x256xi32>
      %cst_24 = arith.constant 2.000000e+00 : f32
      %41 = vector.broadcast %cst_24 : f32 to vector<16x1xf32>
      %42 = arith.mulf %37, %41 : vector<16x1xf32>
      %43 = vector.broadcast %42 : vector<16x1xf32> to vector<16x256xf32>
      %44 = arith.mulf %31, %43 : vector<16x256xf32>
      %cst_25 = arith.constant 0.000000e+00 : f32
      %45 = vector.broadcast %cst_25 : f32 to vector<16x256xf32>
      %46 = arith.select %40, %44, %45 : vector<16x256xi1>, vector<16x256xf32>
      %c0_26 = arith.constant 0 : index
      %c0_27 = arith.constant 0 : index
      %47 = vector.load %arg5[%c0_26, %c0_27] : memref<16x256xf32, #tpu.memory_space<vmem>>, vector<16x256xf32>
      tpu.vector_store %arg5[%c0_26, %c0_27], %46 {strides = array<i32>} : memref<16x256xf32, #tpu.memory_space<vmem>>, vector<16x256xf32>,
    } else {
    }
    return
  }
  func.func @transform_0(%arg0: i32) -> (i32, i32) {
    %c0_i32 = arith.constant 0 : i32
    %c0_i32_0 = arith.constant 0 : i32
    return %c0_i32, %arg0 : i32, i32
  }
  func.func @transform_1(%arg0: i32) -> (i32, i32) {
    %c0_i32 = arith.constant 0 : i32
    %c0_i32_0 = arith.constant 0 : i32
    return %arg0, %c0_i32 : i32, i32
  }
  func.func @transform_2(%arg0: i32) -> (i32, i32) {
    %c0_i32 = arith.constant 0 : i32
    %c0_i32_0 = arith.constant 0 : i32
    %c0_i32_1 = arith.constant 0 : i32
    return %c0_i32, %c0_i32_0 : i32, i32
  }
  func.func @transform_3(%arg0: i32) -> (i32, i32) {
    %c0_i32 = arith.constant 0 : i32
    %c0_i32_0 = arith.constant 0 : i32
    %c0_i32_1 = arith.constant 0 : i32
    return %c0_i32, %c0_i32_0 : i32, i32
  }
  func.func @transform_4(%arg0: i32) -> (i32, i32) {
    %c0_i32 = arith.constant 0 : i32
    %c0_i32_0 = arith.constant 0 : i32
    %c0_i32_1 = arith.constant 0 : i32
    return %c0_i32, %c0_i32_0 : i32, i32
  }
}

</mosaic_0001>

<llo_original>
// kernel: tpu_custom_call.1
$region0: #{tpu_custom_call.1}
  #allocation0 [shape = 'u32[]', space=smem, size = 0x4, offset = 0x4, fixed_abs, tag = 'smem constant byte address 0x4 - core index']
  #allocation1 [shape = 'u32[144,128]{1,0:T(1,128)}', space=vmem, size = 0x12000, scoped, tag = 'internal scratch']
  %s0 = inlined_call_operand.hbm [shape: bf16[16,512], index: 0, kind: input, shape index: {}]
  %s1 = inlined_call_operand.hbm [shape: bf16[512,256], index: 1, kind: input, shape index: {}]
  %s2 = inlined_call_operand.vmem [shape: f32[1,256], index: 2, kind: input, shape index: {}]
  %s3 = inlined_call_operand.hbm [shape: s32[16,256], index: 3, kind: input, shape index: {}]
  %s4 = inlined_call_operand.hbm [shape: f32[16,256], index: 4, kind: output, shape index: {}]
  %s5 = sld [smem:[#allocation0]]
  $region46: #{tpu_custom_call.1} parent=0
    _
  %s7 = ssub.s32 1, %s5
  %s8 = scalar_select 0, %s7, %s5
  $region1: #{tpu_custom_call.1} parent=0
    #allocation2 [shape = 'u8[16384]{0}', space=vmem, size = 0x4000, scoped, tag = 'input window, operand 0, single buffered']
    #allocation3 [shape = 's32[1]{0}', space=sflag, size = 0x4, scoped, tag = 'scoped memory for tpu_custom_call.1']
    #allocation4 [shape = 's32[1]{0}', space=sflag, size = 0x4, scoped, tag = 'scoped memory for tpu_custom_call.1']
    #allocation5 [shape = 'u8[262144]{0}', space=vmem, size = 0x40000, scoped, tag = 'input window, operand 1, single buffered']
    #allocation6 [shape = 's32[1]{0}', space=sflag, size = 0x4, scoped, tag = 'scoped memory for tpu_custom_call.1']
    #allocation7 [shape = 'u8[16384]{0}', space=vmem, size = 0x4000, scoped, tag = 'input window, operand 3, single buffered']
    #allocation8 [shape = 'u8[16384]{0}', space=vmem, size = 0x4000, scoped, tag = 'output window, operand 0, single buffered']
    %9 = vsyncpa [#allocation3], 0
    %10 = vsyncpa [#allocation6], 0
    %11 = vsyncpa [#allocation4], 0
    // Predicated region
    $region2: #{tpu_custom_call.1} parent=1 // pred_check
      _
    $region3: #{tpu_custom_call.1} parent=1 // pred_check_branch
      %13 = sbr.rel (0) target = $region5
    $region4: #{tpu_custom_call.1} parent=1 // pred_region
      %s15 = ssub.s32 512, 512
      %16 = vsyncadd [#allocation3], %s15
      %s17 = sshll.u32 [#allocation2], 4
      %s18 = int_to_ptr.vmem [resolvable:$true] %s17
      %23 = dma.hbm_to_vmem [thread:$0]  %s0, 512, %s18, [#allocation3], 256, 256, 16
    $region5: #{tpu_custom_call.1} parent=1 // pred_fallthru
      _
    // Predicated region
    $region6: #{tpu_custom_call.1} parent=1 // pred_check
      _
    $region7: #{tpu_custom_call.1} parent=1 // pred_check_branch
      %25 = sbr.rel (0) target = $region9
    $region8: #{tpu_custom_call.1} parent=1 // pred_region
      %s27 = ssub.s32 8192, 8192
      %28 = vsyncadd [#allocation6], %s27
      %s29 = sshll.u32 [#allocation5], 4
      %s30 = int_to_ptr.vmem [resolvable:$true] %s29
      %35 = dma.hbm_to_vmem [thread:$0]  %s1, 8192, %s30, [#allocation6], 128, 128, 8
    $region9: #{tpu_custom_call.1} parent=1 // pred_fallthru
      _
    // Predicated region
    $region10: #{tpu_custom_call.1} parent=1 // pred_check
      _
    $region11: #{tpu_custom_call.1} parent=1 // pred_check_branch
      %37 = sbr.rel (0) target = $region13
    $region12: #{tpu_custom_call.1} parent=1 // pred_region
      _
    $region13: #{tpu_custom_call.1} parent=1 // pred_fallthru
      _
    // Predicated region
    $region14: #{tpu_custom_call.1} parent=1 // pred_check
      _
    $region15: #{tpu_custom_call.1} parent=1 // pred_check_branch
      %39 = sbr.rel (0) target = $region17
    $region16: #{tpu_custom_call.1} parent=1 // pred_region
      %s41 = ssub.s32 512, 512
      %42 = vsyncadd [#allocation6], %s41
      %s43 = sshll.u32 [#allocation7], 4
      %s44 = int_to_ptr.vmem [resolvable:$true] %s43
      %49 = dma.hbm_to_vmem [thread:$0]  %s3, 512, %s44, [#allocation6], 256, 256, 16
    $region17: #{tpu_custom_call.1} parent=1 // pred_fallthru
      _
    // Predicated region
    $region18: #{tpu_custom_call.1} parent=1 // pred_check
      _
    $region19: #{tpu_custom_call.1} parent=1 // pred_check_branch
      %51 = sbr.rel (0) target = $region21
    $region20: #{tpu_custom_call.1} parent=1 // pred_region
      %52 = dma.done [#allocation3], 512
    $region21: #{tpu_custom_call.1} parent=1 // pred_fallthru
      _
    // Predicated region
    $region22: #{tpu_custom_call.1} parent=1 // pred_check
      _
    $region23: #{tpu_custom_call.1} parent=1 // pred_check_branch
      %54 = sbr.rel (0) target = $region25
    $region24: #{tpu_custom_call.1} parent=1 // pred_region
      %55 = dma.done [#allocation6], 8192
    $region25: #{tpu_custom_call.1} parent=1 // pred_fallthru
      _
    // Predicated region
    $region26: #{tpu_custom_call.1} parent=1 // pred_check
      _
    $region27: #{tpu_custom_call.1} parent=1 // pred_check_branch
      %57 = sbr.rel (0) target = $region29
    $region28: #{tpu_custom_call.1} parent=1 // pred_region
      %58 = dma.done [#allocation6], 512
    $region29: #{tpu_custom_call.1} parent=1 // pred_fallthru
      _
    %p59 = scmp.eq.s32.totalorder 0, 0
    // Predicated region
    $region30: #{tpu_custom_call.1} parent=1 // pred_check
      %p60 = pneg %p59
    $region31: #{tpu_custom_call.1} parent=1 // pred_check_branch
      %62 = sbr.rel (%p60) target = $region33
    $region32: #{tpu_custom_call.1} parent=1 // pred_region
      %63 = vst [vmem:[#allocation8] sm:$0xff] 0.0
      %64 = vst [vmem:[#allocation8 + $0x8] sm:$0xff] 0.0
      %65 = vst [vmem:[#allocation8 + $0x10] sm:$0xff] 0.0
      %66 = vst [vmem:[#allocation8 + $0x18] sm:$0xff] 0.0
    $region33: #{tpu_custom_call.1} parent=1 // pred_fallthru
      _
    %v67 = vld [vmem:[#allocation8] sm:$0xff]
    %v68 = vld [vmem:[#allocation8 + $0x8] sm:$0xff]
    %v69 = vld [vmem:[#allocation8 + $0x10] sm:$0xff]
    %v70 = vld [vmem:[#allocation8 + $0x18] sm:$0xff]
    %v71 = vld [vmem:[#allocation2] sm:$0xff]
    %v72 = vld [vmem:[#allocation2 + $0x8] sm:$0xff]
    %v73 = vld [vmem:[#allocation2 + $0x10] sm:$0xff]
    %v74 = vld [vmem:[#allocation2 + $0x18] sm:$0xff]
    %v75 = vld [vmem:[#allocation5] sm:$0xff]
    %v76 = vld [vmem:[#allocation5 + $0x8] sm:$0xff]
    %v77 = vld [vmem:[#allocation5 + $0x10] sm:$0xff]
    %v78 = vld [vmem:[#allocation5 + $0x18] sm:$0xff]
    %v79 = vld [vmem:[#allocation5 + $0x20] sm:$0xff]
    %v80 = vld [vmem:[#allocation5 + $0x28] sm:$0xff]
    %v81 = vld [vmem:[#allocation5 + $0x30] sm:$0xff]
    %v82 = vld [vmem:[#allocation5 + $0x38] sm:$0xff]
    %v83 = vld [vmem:[#allocation5 + $0x40] sm:$0xff]
    %v84 = vld [vmem:[#allocation5 + $0x48] sm:$0xff]
    %v85 = vld [vmem:[#allocation5 + $0x50] sm:$0xff]
    %v86 = vld [vmem:[#allocation5 + $0x58] sm:$0xff]
    %v87 = vld [vmem:[#allocation5 + $0x60] sm:$0xff]
    %v88 = vld [vmem:[#allocation5 + $0x68] sm:$0xff]
    %v89 = vld [vmem:[#allocation5 + $0x70] sm:$0xff]
    %v90 = vld [vmem:[#allocation5 + $0x78] sm:$0xff]
    %v91 = vld [vmem:[#allocation5 + $0x80] sm:$0xff]
    %v92 = vld [vmem:[#allocation5 + $0x88] sm:$0xff]
    %v93 = vld [vmem:[#allocation5 + $0x90] sm:$0xff]
    %v94 = vld [vmem:[#allocation5 + $0x98] sm:$0xff]
    %v95 = vld [vmem:[#allocation5 + $0xa0] sm:$0xff]
    %v96 = vld [vmem:[#allocation5 + $0xa8] sm:$0xff]
    %v97 = vld [vmem:[#allocation5 + $0xb0] sm:$0xff]
    %v98 = vld [vmem:[#allocation5 + $0xb8] sm:$0xff]
    %v99 = vld [vmem:[#allocation5 + $0xc0] sm:$0xff]
    %v100 = vld [vmem:[#allocation5 + $0xc8] sm:$0xff]
    %v101 = vld [vmem:[#allocation5 + $0xd0] sm:$0xff]
    %v102 = vld [vmem:[#allocation5 + $0xd8] sm:$0xff]
    %v103 = vld [vmem:[#allocation5 + $0xe0] sm:$0xff]
    %v104 = vld [vmem:[#allocation5 + $0xe8] sm:$0xff]
    %v105 = vld [vmem:[#allocation5 + $0xf0] sm:$0xff]
    %v106 = vld [vmem:[#allocation5 + $0xf8] sm:$0xff]
    %v107 = vld [vmem:[#allocation5 + $0x100] sm:$0xff]
    %v108 = vld [vmem:[#allocation5 + $0x108] sm:$0xff]
    %v109 = vld [vmem:[#allocation5 + $0x110] sm:$0xff]
    %v110 = vld [vmem:[#allocation5 + $0x118] sm:$0xff]
    %v111 = vld [vmem:[#allocation5 + $0x120] sm:$0xff]
    %v112 = vld [vmem:[#allocation5 + $0x128] sm:$0xff]
    %v113 = vld [vmem:[#allocation5 + $0x130] sm:$0xff]
    %v114 = vld [vmem:[#allocation5 + $0x138] sm:$0xff]
    %v115 = vld [vmem:[#allocation5 + $0x140] sm:$0xff]
    %v116 = vld [vmem:[#allocation5 + $0x148] sm:$0xff]
    %v117 = vld [vmem:[#allocation5 + $0x150] sm:$0xff]
    %v118 = vld [vmem:[#allocation5 + $0x158] sm:$0xff]
    %v119 = vld [vmem:[#allocation5 + $0x160] sm:$0xff]
    %v120 = vld [vmem:[#allocation5 + $0x168] sm:$0xff]
    %v121 = vld [vmem:[#allocation5 + $0x170] sm:$0xff]
    %v122 = vld [vmem:[#allocation5 + $0x178] sm:$0xff]
    %v123 = vld [vmem:[#allocation5 + $0x180] sm:$0xff]
    %v124 = vld [vmem:[#allocation5 + $0x188] sm:$0xff]
    %v125 = vld [vmem:[#allocation5 + $0x190] sm:$0xff]
    %v126 = vld [vmem:[#allocation5 + $0x198] sm:$0xff]
    %v127 = vld [vmem:[#allocation5 + $0x1a0] sm:$0xff]
    %v128 = vld [vmem:[#allocation5 + $0x1a8] sm:$0xff]
    %v129 = vld [vmem:[#allocation5 + $0x1b0] sm:$0xff]
    %v130 = vld [vmem:[#allocation5 + $0x1b8] sm:$0xff]
    %v131 = vld [vmem:[#allocation5 + $0x1c0] sm:$0xff]
    %v132 = vld [vmem:[#allocation5 + $0x1c8] sm:$0xff]
    %v133 = vld [vmem:[#allocation5 + $0x1d0] sm:$0xff]
    %v134 = vld [vmem:[#allocation5 + $0x1d8] sm:$0xff]
    %v135 = vld [vmem:[#allocation5 + $0x1e0] sm:$0xff]
    %v136 = vld [vmem:[#allocation5 + $0x1e8] sm:$0xff]
    %v137 = vld [vmem:[#allocation5 + $0x1f0] sm:$0xff]
    %v138 = vld [vmem:[#allocation5 + $0x1f8] sm:$0xff]
    %v143 = vunpack.c.l.b16 %v71
    %v144 = vunpack.c.h.b16 %v71
    %v145 = vunpack.c.l.b16 %v72
    %v146 = vunpack.c.h.b16 %v72
    %v147 = vunpack.c.l.b16 %v73
    %v148 = vunpack.c.h.b16 %v73
    %v149 = vunpack.c.l.b16 %v74
    %v150 = vunpack.c.h.b16 %v74
    %v151 = vpack.c.b16 %v147, %v143
    %v152 = vpack.c.b16 %v148, %v144
    %v153 = vpack.c.b16 %v149, %v145
    %v154 = vpack.c.b16 %v150, %v146
    %v223 = vunpack.c.l.b16 %v75
    %v224 = vunpack.c.h.b16 %v75
    %v225 = vunpack.c.l.b16 %v76
    %v226 = vunpack.c.h.b16 %v76
    %v227 = vunpack.c.l.b16 %v77
    %v228 = vunpack.c.h.b16 %v77
    %v229 = vunpack.c.l.b16 %v78
    %v230 = vunpack.c.h.b16 %v78
    %v231 = vunpack.c.l.b16 %v79
    %v232 = vunpack.c.h.b16 %v79
    %v233 = vunpack.c.l.b16 %v80
    %v234 = vunpack.c.h.b16 %v80
    %v235 = vunpack.c.l.b16 %v81
    %v236 = vunpack.c.h.b16 %v81
    %v237 = vunpack.c.l.b16 %v82
    %v238 = vunpack.c.h.b16 %v82
    %v239 = vunpack.c.l.b16 %v83
    %v240 = vunpack.c.h.b16 %v83
    %v241 = vunpack.c.l.b16 %v84
    %v242 = vunpack.c.h.b16 %v84
    %v243 = vunpack.c.l.b16 %v85
    %v244 = vunpack.c.h.b16 %v85
    %v245 = vunpack.c.l.b16 %v86
    %v246 = vunpack.c.h.b16 %v86
    %v247 = vunpack.c.l.b16 %v87
    %v248 = vunpack.c.h.b16 %v87
    %v249 = vunpack.c.l.b16 %v88
    %v250 = vunpack.c.h.b16 %v88
    %v251 = vunpack.c.l.b16 %v89
    %v252 = vunpack.c.h.b16 %v89
    %v253 = vunpack.c.l.b16 %v90
    %v254 = vunpack.c.h.b16 %v90
    %v255 = vunpack.c.l.b16 %v91
    %v256 = vunpack.c.h.b16 %v91
    %v257 = vunpack.c.l.b16 %v92
    %v258 = vunpack.c.h.b16 %v92
    %v259 = vunpack.c.l.b16 %v93
    %v260 = vunpack.c.h.b16 %v93
    %v261 = vunpack.c.l.b16 %v94
    %v262 = vunpack.c.h.b16 %v94
    %v263 = vunpack.c.l.b16 %v95
    %v264 = vunpack.c.h.b16 %v95
    %v265 = vunpack.c.l.b16 %v96
    %v266 = vunpack.c.h.b16 %v96
    %v267 = vunpack.c.l.b16 %v97
    %v268 = vunpack.c.h.b16 %v97
    %v269 = vunpack.c.l.b16 %v98
    %v270 = vunpack.c.h.b16 %v98
    %v271 = vunpack.c.l.b16 %v99
    %v272 = vunpack.c.h.b16 %v99
    %v273 = vunpack.c.l.b16 %v100
    %v274 = vunpack.c.h.b16 %v100
    %v275 = vunpack.c.l.b16 %v101
    %v276 = vunpack.c.h.b16 %v101
    %v277 = vunpack.c.l.b16 %v102
    %v278 = vunpack.c.h.b16 %v102
    %v279 = vunpack.c.l.b16 %v103
    %v280 = vunpack.c.h.b16 %v103
    %v281 = vunpack.c.l.b16 %v104
    %v282 = vunpack.c.h.b16 %v104
    %v283 = vunpack.c.l.b16 %v105
    %v284 = vunpack.c.h.b16 %v105
    %v285 = vunpack.c.l.b16 %v106
    %v286 = vunpack.c.h.b16 %v106
    %v287 = vunpack.c.l.b16 %v107
    %v288 = vunpack.c.h.b16 %v107
    %v289 = vunpack.c.l.b16 %v108
    %v290 = vunpack.c.h.b16 %v108
    %v291 = vunpack.c.l.b16 %v109
    %v292 = vunpack.c.h.b16 %v109
    %v293 = vunpack.c.l.b16 %v110
    %v294 = vunpack.c.h.b16 %v110
    %v295 = vunpack.c.l.b16 %v111
    %v296 = vunpack.c.h.b16 %v111
    %v297 = vunpack.c.l.b16 %v112
    %v298 = vunpack.c.h.b16 %v112
    %v299 = vunpack.c.l.b16 %v113
    %v300 = vunpack.c.h.b16 %v113
    %v301 = vunpack.c.l.b16 %v114
    %v302 = vunpack.c.h.b16 %v114
    %v303 = vunpack.c.l.b16 %v115
    %v304 = vunpack.c.h.b16 %v115
    %v305 = vunpack.c.l.b16 %v116
    %v306 = vunpack.c.h.b16 %v116
    %v307 = vunpack.c.l.b16 %v117
    %v308 = vunpack.c.h.b16 %v117
    %v309 = vunpack.c.l.b16 %v118
    %v310 = vunpack.c.h.b16 %v118
    %v311 = vunpack.c.l.b16 %v119
    %v312 = vunpack.c.h.b16 %v119
    %v313 = vunpack.c.l.b16 %v120
    %v314 = vunpack.c.h.b16 %v120
    %v315 = vunpack.c.l.b16 %v121
    %v316 = vunpack.c.h.b16 %v121
    %v317 = vunpack.c.l.b16 %v122
    %v318 = vunpack.c.h.b16 %v122
    %v319 = vunpack.c.l.b16 %v123
    %v320 = vunpack.c.h.b16 %v123
    %v321 = vunpack.c.l.b16 %v124
    %v322 = vunpack.c.h.b16 %v124
    %v323 = vunpack.c.l.b16 %v125
    %v324 = vunpack.c.h.b16 %v125
    %v325 = vunpack.c.l.b16 %v126
    %v326 = vunpack.c.h.b16 %v126
    %v327 = vunpack.c.l.b16 %v127
    %v328 = vunpack.c.h.b16 %v127
    %v329 = vunpack.c.l.b16 %v128
    %v330 = vunpack.c.h.b16 %v128
    %v331 = vunpack.c.l.b16 %v129
    %v332 = vunpack.c.h.b16 %v129
    %v333 = vunpack.c.l.b16 %v130
    %v334 = vunpack.c.h.b16 %v130
    %v335 = vunpack.c.l.b16 %v131
    %v336 = vunpack.c.h.b16 %v131
    %v337 = vunpack.c.l.b16 %v132
    %v338 = vunpack.c.h.b16 %v132
    %v339 = vunpack.c.l.b16 %v133
    %v340 = vunpack.c.h.b16 %v133
    %v341 = vunpack.c.l.b16 %v134
    %v342 = vunpack.c.h.b16 %v134
    %v343 = vunpack.c.l.b16 %v135
    %v344 = vunpack.c.h.b16 %v135
    %v345 = vunpack.c.l.b16 %v136
    %v346 = vunpack.c.h.b16 %v136
    %v347 = vunpack.c.l.b16 %v137
    %v348 = vunpack.c.h.b16 %v137
    %v349 = vunpack.c.l.b16 %v138
    %v350 = vunpack.c.h.b16 %v138
    %v351 = vpack.c.b16 %v225, %v223
    %v352 = vpack.c.b16 %v226, %v224
    %v353 = vpack.c.b16 %v229, %v227
    %v354 = vpack.c.b16 %v230, %v228
    %v355 = vpack.c.b16 %v233, %v231
    %v356 = vpack.c.b16 %v234, %v232
    %v357 = vpack.c.b16 %v237, %v235
    %v358 = vpack.c.b16 %v238, %v236
    %v359 = vpack.c.b16 %v241, %v239
    %v360 = vpack.c.b16 %v242, %v240
    %v361 = vpack.c.b16 %v245, %v243
    %v362 = vpack.c.b16 %v246, %v244
    %v363 = vpack.c.b16 %v249, %v247
    %v364 = vpack.c.b16 %v250, %v248
    %v365 = vpack.c.b16 %v253, %v251
    %v366 = vpack.c.b16 %v254, %v252
    %v367 = vpack.c.b16 %v257, %v255
    %v368 = vpack.c.b16 %v258, %v256
    %v369 = vpack.c.b16 %v261, %v259
    %v370 = vpack.c.b16 %v262, %v260
    %v371 = vpack.c.b16 %v265, %v263
    %v372 = vpack.c.b16 %v266, %v264
    %v373 = vpack.c.b16 %v269, %v267
    %v374 = vpack.c.b16 %v270, %v268
    %v375 = vpack.c.b16 %v273, %v271
    %v376 = vpack.c.b16 %v274, %v272
    %v377 = vpack.c.b16 %v277, %v275
    %v378 = vpack.c.b16 %v278, %v276
    %v379 = vpack.c.b16 %v281, %v279
    %v380 = vpack.c.b16 %v282, %v280
    %v381 = vpack.c.b16 %v285, %v283
    %v382 = vpack.c.b16 %v286, %v284
    %v383 = vpack.c.b16 %v289, %v287
    %v384 = vpack.c.b16 %v290, %v288
    %v385 = vpack.c.b16 %v293, %v291
    %v386 = vpack.c.b16 %v294, %v292
    %v387 = vpack.c.b16 %v297, %v295
    %v388 = vpack.c.b16 %v298, %v296
    %v389 = vpack.c.b16 %v301, %v299
    %v390 = vpack.c.b16 %v302, %v300
    %v391 = vpack.c.b16 %v305, %v303
    %v392 = vpack.c.b16 %v306, %v304
    %v393 = vpack.c.b16 %v309, %v307
    %v394 = vpack.c.b16 %v310, %v308
    %v395 = vpack.c.b16 %v313, %v311
    %v396 = vpack.c.b16 %v314, %v312
    %v397 = vpack.c.b16 %v317, %v315
    %v398 = vpack.c.b16 %v318, %v316
    %v399 = vpack.c.b16 %v321, %v319
    %v400 = vpack.c.b16 %v322, %v320
    %v401 = vpack.c.b16 %v325, %v323
    %v402 = vpack.c.b16 %v326, %v324
    %v403 = vpack.c.b16 %v329, %v327
    %v404 = vpack.c.b16 %v330, %v328
    %v405 = vpack.c.b16 %v333, %v331
    %v406 = vpack.c.b16 %v334, %v332
    %v407 = vpack.c.b16 %v337, %v335
    %v408 = vpack.c.b16 %v338, %v336
    %v409 = vpack.c.b16 %v341, %v339
    %v410 = vpack.c.b16 %v342, %v340
    %v411 = vpack.c.b16 %v345, %v343
    %v412 = vpack.c.b16 %v346, %v344
    %v413 = vpack.c.b16 %v349, %v347
    %v414 = vpack.c.b16 %v350, %v348
    %479 = vmatprep.subr.bf16.mxu0 %v352
    %480 = vmatpush1.bf16.msra.mxu0 %v351
    %481 = vmatprep.subr.bf16.mxu0 %v354
    %482 = vmatpush1.bf16.msra.mxu0 %v353
    %483 = vmatprep.subr.bf16.mxu0 %v356
    %484 = vmatpush1.bf16.msra.mxu0 %v355
    %485 = vmatprep.subr.bf16.mxu0 %v358
    %486 = vmatpush1.bf16.msra.mxu0 %v357
    %487 = vmatprep.subr.bf16.mxu0 %v360
    %488 = vmatpush1.bf16.msra.mxu0 %v359
    %489 = vmatprep.subr.bf16.mxu0 %v362
    %490 = vmatpush1.bf16.msra.mxu0 %v361
    %491 = vmatprep.subr.bf16.mxu0 %v364
    %492 = vmatpush1.bf16.msra.mxu0 %v363
    %493 = vmatprep.subr.bf16.mxu0 %v366
    %494 = vmatpush1.bf16.msra.mxu0 %v365
    %495 = vmatprep.subr.bf16.mxu0 %v368
    %496 = vmatpush1.bf16.msra.mxu0 %v367
    %497 = vmatprep.subr.bf16.mxu0 %v370
    %498 = vmatpush1.bf16.msra.mxu0 %v369
    %499 = vmatprep.subr.bf16.mxu0 %v372
    %500 = vmatpush1.bf16.msra.mxu0 %v371
    %501 = vmatprep.subr.bf16.mxu0 %v374
    %502 = vmatpush1.bf16.msra.mxu0 %v373
    %503 = vmatprep.subr.bf16.mxu0 %v376
    %504 = vmatpush1.bf16.msra.mxu0 %v375
    %505 = vmatprep.subr.bf16.mxu0 %v378
    %506 = vmatpush1.bf16.msra.mxu0 %v377
    %507 = vmatprep.subr.bf16.mxu0 %v380
    %508 = vmatpush1.bf16.msra.mxu0 %v379
    %509 = vmatprep.subr.bf16.mxu0 %v382
    %510 = vmatpush1.bf16.msra.mxu0 %v381
    %511 = vmatprep.mubr.bf16.mxu0 %v152
    %512 = vmatmul.mubr.bf16.gmra.mrb[0].mxu0 %v151
    %v513 = vpop.f32.mrb[0].mxu0
    %v514 = vadd.f32 0.0, %v513
    %v515 = vpop.f32.mrb[0].mxu0
    %v516 = vadd.f32 0.0, %v515
    %v517 = vpop.f32.mrb[0].mxu0
    %v518 = vadd.f32 0.0, %v517
    %v519 = vpop.f32.mrb[0].mxu0
    %v520 = vadd.f32 0.0, %v519
    %521 = vdwg.mxu0
    %522 = vmatprep.subr.bf16.mxu0 %v384
    %523 = vmatpush1.bf16.msra.mxu0 %v383
    %524 = vmatprep.subr.bf16.mxu0 %v386
    %525 = vmatpush1.bf16.msra.mxu0 %v385
    %526 = vmatprep.subr.bf16.mxu0 %v388
    %527 = vmatpush1.bf16.msra.mxu0 %v387
    %528 = vmatprep.subr.bf16.mxu0 %v390
    %529 = vmatpush1.bf16.msra.mxu0 %v389
    %530 = vmatprep.subr.bf16.mxu0 %v392
    %531 = vmatpush1.bf16.msra.mxu0 %v391
    %532 = vmatprep.subr.bf16.mxu0 %v394
    %533 = vmatpush1.bf16.msra.mxu0 %v393
    %534 = vmatprep.subr.bf16.mxu0 %v396
    %535 = vmatpush1.bf16.msra.mxu0 %v395
    %536 = vmatprep.subr.bf16.mxu0 %v398
    %537 = vmatpush1.bf16.msra.mxu0 %v397
    %538 = vmatprep.subr.bf16.mxu0 %v400
    %539 = vmatpush1.bf16.msra.mxu0 %v399
    %540 = vmatprep.subr.bf16.mxu0 %v402
    %541 = vmatpush1.bf16.msra.mxu0 %v401
    %542 = vmatprep.subr.bf16.mxu0 %v404
    %543 = vmatpush1.bf16.msra.mxu0 %v403
    %544 = vmatprep.subr.bf16.mxu0 %v406
    %545 = vmatpush1.bf16.msra.mxu0 %v405
    %546 = vmatprep.subr.bf16.mxu0 %v408
    %547 = vmatpush1.bf16.msra.mxu0 %v407
    %548 = vmatprep.subr.bf16.mxu0 %v410
    %549 = vmatpush1.bf16.msra.mxu0 %v409
    %550 = vmatprep.subr.bf16.mxu0 %v412
    %551 = vmatpush1.bf16.msra.mxu0 %v411
    %552 = vmatprep.subr.bf16.mxu0 %v414
    %553 = vmatpush1.bf16.msra.mxu0 %v413
    %554 = vmatprep.mubr.bf16.mxu0 %v154
    %555 = vmatmul.mubr.bf16.gmra.mrb[0].mxu0 %v153
    %v556 = vpop.f32.mrb[0].mxu0
    %v557 = vadd.f32 %v514, %v556
    %v558 = vpop.f32.mrb[0].mxu0
    %v559 = vadd.f32 %v516, %v558
    %v560 = vpop.f32.mrb[0].mxu0
    %v561 = vadd.f32 %v518, %v560
    %v562 = vpop.f32.mrb[0].mxu0
    %v563 = vadd.f32 %v520, %v562
    %564 = vdwg.mxu0
    %v565 = vadd.f32 %v67, %v557
    %v566 = vadd.f32 %v68, %v559
    %v567 = vadd.f32 %v69, %v561
    %v568 = vadd.f32 %v70, %v563
    %569 = vst [vmem:[#allocation8] sm:$0xff] %v565
    %570 = vst [vmem:[#allocation8 + $0x8] sm:$0xff] %v566
    %571 = vst [vmem:[#allocation8 + $0x10] sm:$0xff] %v567
    %572 = vst [vmem:[#allocation8 + $0x18] sm:$0xff] %v568
    // Predicated region
    $region34: #{tpu_custom_call.1} parent=1 // pred_check
      %p573 = pneg %p59
    $region35: #{tpu_custom_call.1} parent=1 // pred_check_branch
      %575 = sbr.rel (%p573) target = $region37
    $region36: #{tpu_custom_call.1} parent=1 // pred_region
      %v576 = vld [vmem:[#allocation8] sm:$0xff]
      %v577 = vld [vmem:[#allocation8 + $0x8] sm:$0xff]
      %v578 = vld [vmem:[#allocation8 + $0x10] sm:$0xff]
      %v579 = vld [vmem:[#allocation8 + $0x18] sm:$0xff]
      %v580 = vld [vmem:[%s2] sm:$0x3]
      %v582 = vlaneseq
      %v583 = vshrl.u32 %v582, 7
      %v584 = vsub.s32 0, %v583
      %v585 = vrot.slane %v580, %v584
      %v586 = vlaneseq
      %v587 = vshrl.u32 %v586, 7
      %v588 = vsub.s32 1, %v587
      %v589 = vrot.slane %v580, %v588
      %v592 = vadd.f32 %v576, %v585
      %v593 = vadd.f32 %v577, %v589
      %v594 = vadd.f32 %v578, %v585
      %v595 = vadd.f32 %v579, %v589
      %v596 = vadd.f32 %v592, %v594
      %v597 = vrot.slane %v596, 4
      %v598 = vadd.f32 %v596, %v597
      %v599 = vrot.slane %v598, 2
      %v600 = vadd.f32 %v598, %v599
      %v601 = vrot.slane %v600, 1
      %v602 = vadd.f32 %v600, %v601
      %v603 = vadd.f32 %v593, %v595
      %v604 = vrot.slane %v603, 4
      %v605 = vadd.f32 %v603, %v604
      %v606 = vrot.slane %v605, 2
      %v607 = vadd.f32 %v605, %v606
      %v608 = vrot.slane %v607, 1
      %v609 = vadd.f32 %v607, %v608
      %v610 = vrcp.pop 16.0
      %v611 = vmul.f32 %v602, %v610
      %v612 = vmul.f32 %v609, %v610
      %v613 = vsub.f32 %v592, %v611
      %v614 = vsub.f32 %v593, %v612
      %v615 = vsub.f32 %v594, %v611
      %v616 = vsub.f32 %v595, %v612
      %v617 = vmul.f32 %v613, %v613
      %v618 = vmul.f32 %v614, %v614
      %v619 = vmul.f32 %v615, %v615
      %v620 = vmul.f32 %v616, %v616
      %v621 = vadd.f32 %v617, %v619
      %v622 = vrot.slane %v621, 4
      %v623 = vadd.f32 %v621, %v622
      %v624 = vrot.slane %v623, 2
      %v625 = vadd.f32 %v623, %v624
      %v626 = vrot.slane %v625, 1
      %v627 = vadd.f32 %v625, %v626
      %v628 = vadd.f32 %v618, %v620
      %v629 = vrot.slane %v628, 4
      %v630 = vadd.f32 %v628, %v629
      %v631 = vrot.slane %v630, 2
      %v632 = vadd.f32 %v630, %v631
      %v633 = vrot.slane %v632, 1
      %v634 = vadd.f32 %v632, %v633
      %v635 = vmul.f32 %v627, %v610
      %v636 = vmul.f32 %v634, %v610
      %v637 = vadd.f32 %v635, 1e-05
      %v638 = vadd.f32 %v636, 1e-05
      %v639 = vrsqrt.pop %v637
      %v640 = vrsqrt.pop %v638
      %v641 = vmul.f32 %v613, %v639
      %v642 = vmul.f32 %v614, %v640
      %v643 = vmul.f32 %v615, %v639
      %v644 = vmul.f32 %v616, %v640
      %v645 = vmul.f32 %v641, %v641
      %v646 = vmul.f32 %v642, %v642
      %v647 = vmul.f32 %v643, %v643
      %v648 = vmul.f32 %v644, %v644
      %v649 = vadd.f32 %v645, %v646
      %650 = vadd.xlane.f32.xlu0 %v649
      %v651 = vpop.xlane.xlu0 %650
      %v652 = vadd.f32 %v647, %v648
      %653 = vadd.xlane.f32.xlu0 %v652
      %v654 = vpop.xlane.xlu0 %653
      %v655 = vmax.f32 %v651, 1e-24
      %v656 = vmax.f32 %v654, 1e-24
      %v657 = vrsqrt.pop %v655
      %v658 = vrsqrt.pop %v656
      %v659 = vld [vmem:[#allocation7] sm:$0xff]
      %v660 = vld [vmem:[#allocation7 + $0x8] sm:$0xff]
      %v661 = vld [vmem:[#allocation7 + $0x10] sm:$0xff]
      %v662 = vld [vmem:[#allocation7 + $0x18] sm:$0xff]
      %vm663 = vcmp.ge.s32.totalorder %v659, 0
      %vm664 = vcmp.ge.s32.totalorder %v660, 0
      %vm665 = vcmp.ge.s32.totalorder %v661, 0
      %vm666 = vcmp.ge.s32.totalorder %v662, 0
      %v667 = vmul.f32 %v657, 2.0
      %v668 = vmul.f32 %v658, 2.0
      %v669 = vmul.f32 %v641, %v667
      %v670 = vmul.f32 %v642, %v667
      %v671 = vmul.f32 %v643, %v668
      %v672 = vmul.f32 %v644, %v668
      %v673 = vsel %vm663, %v669, 0.0
      %v674 = vsel %vm664, %v670, 0.0
      %v675 = vsel %vm665, %v671, 0.0
      %v676 = vsel %vm666, %v672, 0.0
      %677 = vst [vmem:[#allocation8] sm:$0xff] %v673
      %678 = vst [vmem:[#allocation8 + $0x8] sm:$0xff] %v674
      %679 = vst [vmem:[#allocation8 + $0x10] sm:$0xff] %v675
      %680 = vst [vmem:[#allocation8 + $0x18] sm:$0xff] %v676
    $region37: #{tpu_custom_call.1} parent=1 // pred_fallthru
      _
    // Predicated region
    $region38: #{tpu_custom_call.1} parent=1 // pred_check
      _
    $region39: #{tpu_custom_call.1} parent=1 // pred_check_branch
      %682 = sbr.rel (0) target = $region41
    $region40: #{tpu_custom_call.1} parent=1 // pred_region
      %s684 = ssub.s32 512, 512
      %685 = vsyncadd [#allocation4], %s684
      %s686 = sshll.u32 [#allocation8], 4
      %s687 = int_to_ptr.vmem [resolvable:$true] %s686
      %692 = dma.vmem_to_hbm [thread:$0]  %s687, 512, %s4, [#allocation4], 256, 256, 16
    $region41: #{tpu_custom_call.1} parent=1 // pred_fallthru
      _
    // Predicated region
    $region42: #{tpu_custom_call.1} parent=1 // pred_check
      _
    $region43: #{tpu_custom_call.1} parent=1 // pred_check_branch
      %694 = sbr.rel (0) target = $region45
    $region44: #{tpu_custom_call.1} parent=1 // pred_region
      %695 = dma.done [#allocation4], 512
    $region45: #{tpu_custom_call.1} parent=1 // pred_fallthru
      _
    %696 = vsyncpa [#allocation3], 1
    %697 = vsyncpa [#allocation6], 1
    %698 = vsyncpa [#allocation4], 1

</llo_original>
